<compile_context>
chip_gen: v7x
topology: tpu7x:2x2x1
jax: 0.10.0
libtpu: 0.0.40
codegen_flags: <defaults>
</compile_context>

<pallas_src>
import jax
import jax.numpy as jnp
from jax.experimental import pallas as pl
from jax.experimental.pallas import tpu as pltpu


def _round_up(x: int, m: int) -> int:
    return ((x + m - 1) // m) * m


def _vmem_capacity_bytes() -> int:
    """Physical per-core VMEM; conservative 64 MiB (v7x) fallback."""
    try:
        return int(pltpu.get_tpu_info().vmem_capacity_bytes)
    except Exception:
        return 64 * 1024 * 1024


def _select_tiles(M, d_model_p, d_ff_p, in_isz, out_isz, vmem_cap,
                  tm_cap=1024, tk_target=512):
    """Pick (tm, tk): tk a 128-multiple divisor of d_ff_p, tm as large as the
    VMEM budget allows (double-buffered tiles + f32 acc + h intermediate)."""
    budget = int(vmem_cap * 0.55)          # headroom for Mosaic internals
    tm_lim = min(_round_up(max(tm_cap, 8), 8), _round_up(M, 8))
    tk_hi = min(max(tk_target, 128), d_ff_p)
    cands = [t for t in range(128, tk_hi + 1, 128) if d_ff_p % t == 0]
    if not cands:                          # unreachable (d_ff_p % 128 == 0)
        cands = [128]

    best_tm, best_tk = 0, cands[0]
    for tk in sorted(cands, reverse=True):
        per_row = (2 * d_model_p * in_isz          # x tile (double-buffered)
                   + 2 * d_model_p * out_isz       # out tile (double-buffered)
                   + 4 * d_model_p                 # f32 accumulator scratch
                   + tk * (4 + in_isz))            # h intermediate + cast copy
        fixed = (4 * d_model_p * tk * in_isz       # W1 + W2 slabs (x2 buffers)
                 + 2 * (tk + d_model_p) * 4)       # bias slabs (f32)
        tm = max(0, budget - fixed) // per_row
        tm = min(tm_lim, (tm // 8) * 8)
        if tm > best_tm:                           # ties keep the larger tk
            best_tm, best_tk = tm, tk
    if best_tm < 8:
        best_tm = 8                                # tiny-VMEM corner case
    return int(best_tm), int(best_tk)


def ffn_kernel(x_ref, w1_ref, b1_ref, w2_ref, b2_ref, o_ref, acc_ref):
    # x_ref : (tm, d_model)     w1_ref: (d_model, tk)   b1_ref: (1, tk)   f32
    # w2_ref: (tk, d_model)     b2_ref: (1, d_model) f32
    # o_ref : (tm, d_model)     acc_ref: (tm, d_model) f32 (resident over k)
    k = pl.program_id(1)
    nk = pl.num_programs(1)

    @pl.when(k == 0)
    def _init():
        acc_ref[...] = jnp.zeros_like(acc_ref)

    x = x_ref[...]
    # First matmul on this d_ff slab, f32 accumulate on the MXU.
    h = jnp.dot(x, w1_ref[...], preferred_element_type=jnp.float32)
    # Fused bias1 + ReLU for just this slab (live intermediate is (tm, tk)).
    h = jnp.maximum(h + b1_ref[...], 0.0)
    # Second matmul contribution of this slab.
    contrib = jnp.dot(h.astype(w2_ref.dtype), w2_ref[...],
                      preferred_element_type=jnp.float32)

    @pl.when(k < nk - 1)
    def _accumulate():
        acc_ref[...] += contrib

    @pl.when(k == nk - 1)
    def _finalize():
        # Fold the last slab's contribution straight into the store: saves a
        # full (tm, d_model) f32 read-modify-write on the accumulator.
        o_ref[...] = (acc_ref[...] + contrib + b2_ref[...]).astype(o_ref.dtype)


def ffn_pallas(x, w1, b1, w2, b2, *, tm=1024, tk=512, compute_dtype=None):
    """x: (M, d_model); w1: (d_model, d_ff); b1: (d_ff,);
    w2: (d_ff, d_model); b2: (d_model,).  `tm`/`tk` are caps, not forced sizes.
    `compute_dtype=jnp.bfloat16` casts x/W1/W2 for the MXU (f32 accumulation
    is kept); biases stay f32."""
    M, d_model = x.shape
    d_ff = w1.shape[1]
    out_dtype = x.dtype

    if compute_dtype is not None:
        x = x.astype(compute_dtype)
        w1 = w1.astype(compute_dtype)
        w2 = w2.astype(compute_dtype)
    b1 = b1.astype(jnp.float32)
    b2 = b2.astype(jnp.float32)

    in_isz = jnp.dtype(x.dtype).itemsize
    out_isz = jnp.dtype(out_dtype).itemsize

    # --- alignment / tiling --------------------------------------------------
    d_model_p = _round_up(d_model, 128)      # lane-dense last dim
    d_ff_p = _round_up(d_ff, 128)            # pad hidden dim to 128 only
    vmem_cap = _vmem_capacity_bytes()
    tm, tk = _select_tiles(M, d_model_p, d_ff_p, in_isz, out_isz, vmem_cap,
                           tm_cap=tm, tk_target=tk)

    # Nudge the M grid to an even count so it shards cleanly across the two
    # TensorCores on megacore parts (perf hint only).
    grid_m = -(-M // tm)
    if grid_m > 1 and grid_m % 2 == 1:
        tm = max(8, _round_up(-(-M // (grid_m + 1)), 8))
    M_p = _round_up(M, tm)
    grid = (M_p // tm, d_ff_p // tk)

    # --- padding (skipped when already aligned) -------------------------------
    # NOTE: for repeated calls in a hot path, pre-pad the weights once outside
    # this function so they aren't re-materialized in HBM every invocation.
    def _pad2(a, rows, cols):
        pr, pc = rows - a.shape[0], cols - a.shape[1]
        return a if (pr == 0 and pc == 0) else jnp.pad(a, ((0, pr), (0, pc)))

    xp = _pad2(x, M_p, d_model_p)
    w1p = _pad2(w1, d_model_p, d_ff_p)
    w2p = _pad2(w2, d_ff_p, d_model_p)
    b1p = _pad2(b1.reshape(1, -1), 1, d_ff_p)
    b2p = _pad2(b2.reshape(1, -1), 1, d_model_p)

    # --- VMEM budget & cost hint ---------------------------------------------
    vmem_bytes = (
        2 * tm * d_model_p * in_isz              # x tiles (double-buffered)
        + 2 * tm * d_model_p * out_isz           # out tiles
        + 2 * d_model_p * tk * in_isz            # W1 slabs
        + 2 * tk * d_model_p * in_isz            # W2 slabs
        + 2 * (tk + d_model_p) * 4               # bias slabs
        + tm * d_model_p * 4                     # f32 accumulator scratch
        + tm * tk * (4 + in_isz)                 # h intermediate + cast copy
    )
    vmem_limit = int(min(vmem_cap,
                         max(vmem_bytes * 5 // 4, 32 * 1024 * 1024)))

    # Weights are re-streamed once per M tile; make the hint reflect that.
    weight_bytes = (w1p.size + w2p.size) * in_isz
    cost = pl.CostEstimate(
        flops=4 * M_p * d_model_p * d_ff_p,
        transcendentals=0,
        bytes_accessed=int((M_p // tm) * weight_bytes
                           + M_p * d_model_p * (in_isz + out_isz)
                           + (b1p.size + b2p.size) * 4),
    )

    out = pl.pallas_call(
        ffn_kernel,
        out_shape=jax.ShapeDtypeStruct((M_p, d_model_p), out_dtype),
        grid_spec=pltpu.PrefetchScalarGridSpec(
            num_scalar_prefetch=0,
            grid=grid,
            in_specs=[
                pl.BlockSpec((tm, d_model_p), lambda i, k: (i, 0)),   # x rows
                pl.BlockSpec((d_model_p, tk), lambda i, k: (0, k)),   # W1 slab
                pl.BlockSpec((1, tk), lambda i, k: (0, k)),           # b1 slab
                pl.BlockSpec((tk, d_model_p), lambda i, k: (k, 0)),   # W2 slab
                pl.BlockSpec((1, d_model_p), lambda i, k: (0, 0)),    # b2
            ],
            out_specs=pl.BlockSpec((tm, d_model_p), lambda i, k: (i, 0)),
            scratch_shapes=[pltpu.VMEM((tm, d_model_p), jnp.float32)],
        ),
        compiler_params=pltpu.CompilerParams(
            dimension_semantics=("parallel", "arbitrary"),
            vmem_limit_bytes=vmem_limit,
        ),
        cost_estimate=cost,
    )(xp, w1p, b1p, w2p, b2p)

    return out[:M, :d_model]


def ffn_reference(x, w1, b1, w2, b2):
    h = jnp.maximum(x @ w1 + b1, 0.0)
    return h @ w2 + b2


if __name__ == "__main__":
    batch, seq, d_model, d_ff = 2, 8, 32, 64

    key = jax.random.PRNGKey(0)
    kx, kw1, kb1, kw2, kb2 = jax.random.split(key, 5)

    x = jax.random.normal(kx, (batch, seq, d_model), dtype=jnp.float32)

    # Deterministic parameter init (uniform, like PyTorch's default Linear
    # init); stored pre-transposed relative to PyTorch's (out, in) convention.
    lim1 = 1.0 / (d_model ** 0.5)
    lim2 = 1.0 / (d_ff ** 0.5)
    w1 = jax.random.uniform(kw1, (d_model, d_ff), minval=-lim1, maxval=lim1,
                            dtype=jnp.float32)
    b1 = jax.random.uniform(kb1, (d_ff,), minval=-lim1, maxval=lim1,
                            dtype=jnp.float32)
    w2 = jax.random.uniform(kw2, (d_ff, d_model), minval=-lim2, maxval=lim2,
                            dtype=jnp.float32)
    b2 = jax.random.uniform(kb2, (d_model,), minval=-lim2, maxval=lim2,
                            dtype=jnp.float32)

    x2d = x.reshape(batch * seq, d_model)
    out2d = ffn_pallas(x2d, w1, b1, w2, b2)
    out = out2d.reshape(batch, seq, d_model)
    jax.block_until_ready(out)

    ref = ffn_reference(x2d, w1, b1, w2, b2).reshape(batch, seq, d_model)
    assert jnp.allclose(out, ref, atol=1e-5, rtol=1e-5), "mismatch vs reference"

    print("KERNEL_OK")
</pallas_src>

<mosaic_0001>
module attributes {stable_mosaic.version = 11 : i64} {
  func.func @ffn_kernel(%arg0: i32, %arg1: i32, %arg2: memref<16x128xf32, #tpu.memory_space<vmem>>, %arg3: memref<128x128xf32, #tpu.memory_space<vmem>>, %arg4: memref<1x128xf32, #tpu.memory_space<vmem>>, %arg5: memref<128x128xf32, #tpu.memory_space<vmem>>, %arg6: memref<1x128xf32, #tpu.memory_space<vmem>>, %arg7: memref<16x128xf32, #tpu.memory_space<vmem>>, %arg8: memref<16x128xf32, #tpu.memory_space<vmem>>) attributes {dimension_semantics = [#tpu.dimension_semantics<parallel>, #tpu.dimension_semantics<arbitrary>], iteration_bounds = array<i64: 1, 1>, scalar_prefetch = 0 : i64, scratch_operands = 1 : i64, tpu.core_type = #tpu.core_type<tc>, window_params = [{transform_indices = @transform_0, window_bounds = array<i64: 16, 128>}, {transform_indices = @transform_1, window_bounds = array<i64: 128, 128>}, {transform_indices = @transform_2, window_bounds = array<i64: 1, 128>}, {transform_indices = @transform_3, window_bounds = array<i64: 128, 128>}, {pipeline_mode = #tpu.pipeline_mode<synchronous>, transform_indices = @transform_4, window_bounds = array<i64: 1, 128>}, {transform_indices = @transform_5, window_bounds = array<i64: 16, 128>}]} {
    %c0_i32 = arith.constant 0 : i32
    %0 = arith.cmpi eq, %arg1, %c0_i32 : i32
    %1 = arith.extui %0 : i1 to i32
    %c0_i32_0 = arith.constant 0 : i32
    %2 = arith.cmpi ne, %1, %c0_i32_0 : i32
    scf.if %2 {
      %cst_14 = arith.constant 0.000000e+00 : f32
      %19 = vector.broadcast %cst_14 : f32 to vector<16x128xf32>
      %c0_15 = arith.constant 0 : index
      %c0_16 = arith.constant 0 : index
      %20 = vector.load %arg8[%c0_15, %c0_16] : memref<16x128xf32, #tpu.memory_space<vmem>>, vector<16x128xf32>
      tpu.vector_store %arg8[%c0_15, %c0_16], %19 {strides = array<i32>} : memref<16x128xf32, #tpu.memory_space<vmem>>, vector<16x128xf32>,
    } else {
    }
    %c0 = arith.constant 0 : index
    %c0_1 = arith.constant 0 : index
    %3 = vector.load %arg2[%c0, %c0_1] : memref<16x128xf32, #tpu.memory_space<vmem>>, vector<16x128xf32>
    %c0_2 = arith.constant 0 : index
    %c0_3 = arith.constant 0 : index
    %4 = vector.load %arg3[%c0_2, %c0_3] : memref<128x128xf32, #tpu.memory_space<vmem>>, vector<128x128xf32>
    %cst = arith.constant dense<0.000000e+00> : vector<16x128xf32>
    %5 = tpu.matmul %3, %4, %cst {dimension_numbers = #tpu.dot_dimension_numbers<[1], [0], [0], [1], [0, 0, 1, 1], [], []>} : vector<16x128xf32>, vector<128x128xf32>, vector<16x128xf32> -> vector<16x128xf32>
    %c0_4 = arith.constant 0 : index
    %c0_5 = arith.constant 0 : index
    %6 = vector.load %arg4[%c0_4, %c0_5] : memref<1x128xf32, #tpu.memory_space<vmem>>, vector<1x128xf32>
    %7 = vector.broadcast %6 : vector<1x128xf32> to vector<16x128xf32>
    %8 = arith.addf %5, %7 : vector<16x128xf32>
    %cst_6 = arith.constant 0.000000e+00 : f32
    %9 = vector.broadcast %cst_6 : f32 to vector<16x128xf32>
    %10 = arith.maximumf %8, %9 : vector<16x128xf32>
    %c0_7 = arith.constant 0 : index
    %c0_8 = arith.constant 0 : index
    %11 = vector.load %arg5[%c0_7, %c0_8] : memref<128x128xf32, #tpu.memory_space<vmem>>, vector<128x128xf32>
    %cst_9 = arith.constant dense<0.000000e+00> : vector<16x128xf32>
    %12 = tpu.matmul %10, %11, %cst_9 {dimension_numbers = #tpu.dot_dimension_numbers<[1], [0], [0], [1], [0, 0, 1, 1], [], []>} : vector<16x128xf32>, vector<128x128xf32>, vector<16x128xf32> -> vector<16x128xf32>
    %c0_i32_10 = arith.constant 0 : i32
    %13 = arith.cmpi slt, %arg1, %c0_i32_10 : i32
    %14 = arith.extui %13 : i1 to i32
    %c0_i32_11 = arith.constant 0 : i32
    %15 = arith.cmpi ne, %14, %c0_i32_11 : i32
    scf.if %15 {
      %c0_14 = arith.constant 0 : index
      %c0_15 = arith.constant 0 : index
      %19 = vector.load %arg8[%c0_14, %c0_15] : memref<16x128xf32, #tpu.memory_space<vmem>>, vector<16x128xf32>
      %20 = arith.addf %19, %12 : vector<16x128xf32>
      %c0_16 = arith.constant 0 : index
      %c0_17 = arith.constant 0 : index
      %21 = vector.load %arg8[%c0_16, %c0_17] : memref<16x128xf32, #tpu.memory_space<vmem>>, vector<16x128xf32>
      tpu.vector_store %arg8[%c0_16, %c0_17], %20 {strides = array<i32>} : memref<16x128xf32, #tpu.memory_space<vmem>>, vector<16x128xf32>,
    } else {
    }
    %c0_i32_12 = arith.constant 0 : i32
    %16 = arith.cmpi eq, %arg1, %c0_i32_12 : i32
    %17 = arith.extui %16 : i1 to i32
    %c0_i32_13 = arith.constant 0 : i32
    %18 = arith.cmpi ne, %17, %c0_i32_13 : i32
    scf.if %18 {
      %c0_14 = arith.constant 0 : index
      %c0_15 = arith.constant 0 : index
      %19 = vector.load %arg8[%c0_14, %c0_15] : memref<16x128xf32, #tpu.memory_space<vmem>>, vector<16x128xf32>
      %20 = arith.addf %19, %12 : vector<16x128xf32>
      %c0_16 = arith.constant 0 : index
      %c0_17 = arith.constant 0 : index
      %21 = vector.load %arg6[%c0_16, %c0_17] : memref<1x128xf32, #tpu.memory_space<vmem>>, vector<1x128xf32>
      %22 = vector.broadcast %21 : vector<1x128xf32> to vector<16x128xf32>
      %23 = arith.addf %20, %22 : vector<16x128xf32>
      %c0_18 = arith.constant 0 : index
      %c0_19 = arith.constant 0 : index
      %24 = vector.load %arg7[%c0_18, %c0_19] : memref<16x128xf32, #tpu.memory_space<vmem>>, vector<16x128xf32>
      tpu.vector_store %arg7[%c0_18, %c0_19], %23 {strides = array<i32>} : memref<16x128xf32, #tpu.memory_space<vmem>>, vector<16x128xf32>,
    } else {
    }
    return
  }
  func.func @transform_0(%arg0: i32, %arg1: i32) -> (i32, i32) {
    %c0_i32 = arith.constant 0 : i32
    %c0_i32_0 = arith.constant 0 : i32
    return %arg0, %c0_i32 : i32, i32
  }
  func.func @transform_1(%arg0: i32, %arg1: i32) -> (i32, i32) {
    %c0_i32 = arith.constant 0 : i32
    %c0_i32_0 = arith.constant 0 : i32
    return %c0_i32, %arg1 : i32, i32
  }
  func.func @transform_2(%arg0: i32, %arg1: i32) -> (i32, i32) {
    %c0_i32 = arith.constant 0 : i32
    %c0_i32_0 = arith.constant 0 : i32
    return %c0_i32, %arg1 : i32, i32
  }
  func.func @transform_3(%arg0: i32, %arg1: i32) -> (i32, i32) {
    %c0_i32 = arith.constant 0 : i32
    %c0_i32_0 = arith.constant 0 : i32
    return %arg1, %c0_i32 : i32, i32
  }
  func.func @transform_4(%arg0: i32, %arg1: i32) -> (i32, i32) {
    %c0_i32 = arith.constant 0 : i32
    %c0_i32_0 = arith.constant 0 : i32
    %c0_i32_1 = arith.constant 0 : i32
    return %c0_i32, %c0_i32_0 : i32, i32
  }
  func.func @transform_5(%arg0: i32, %arg1: i32) -> (i32, i32) {
    %c0_i32 = arith.constant 0 : i32
    %c0_i32_0 = arith.constant 0 : i32
    return %arg0, %c0_i32 : i32, i32
  }
}

</mosaic_0001>

<llo_original>
// kernel: tpu_custom_call.1
$region0: #{tpu_custom_call.1}
  #allocation0 [shape = 'u32[]', space=smem, size = 0x4, offset = 0x4, fixed_abs, tag = 'smem constant byte address 0x4 - core index']
  #allocation1 [shape = 'u32[144,128]{1,0:T(1,128)}', space=vmem, size = 0x12000, scoped, tag = 'internal scratch']
  #allocation2 [shape = 'f32[16,128]{1,0:T(8,128)}', space=vmem, size = 0x2000, scoped, tag = 'scratch operand']
  %s0 = inlined_call_operand.hbm [shape: f32[16,128], index: 0, kind: input, shape index: {}]
  %s1 = inlined_call_operand.hbm [shape: f32[128,128], index: 1, kind: input, shape index: {}]
  %s2 = inlined_call_operand.vmem [shape: f32[1,128], index: 2, kind: input, shape index: {}]
  %s3 = inlined_call_operand.hbm [shape: f32[128,128], index: 3, kind: input, shape index: {}]
  %s4 = inlined_call_operand.vmem [shape: f32[1,128], index: 4, kind: input, shape index: {}]
  %s5 = inlined_call_operand.hbm [shape: f32[16,128], index: 5, kind: output, shape index: {}]
  %s6 = sld [smem:[#allocation0]]
  $region54: #{tpu_custom_call.1} parent=0
    _
  %s8 = ssub.s32 1, %s6
  %s9 = scalar_select 0, %s8, %s6
  $region1: #{tpu_custom_call.1} parent=0
    #allocation3 [shape = 'u8[8192]{0}', space=vmem, size = 0x2000, scoped, tag = 'input window, operand 0, single buffered']
    #allocation4 [shape = 's32[1]{0}', space=sflag, size = 0x4, scoped, tag = 'scoped memory for tpu_custom_call.1']
    #allocation5 [shape = 's32[1]{0}', space=sflag, size = 0x4, scoped, tag = 'scoped memory for tpu_custom_call.1']
    #allocation6 [shape = 'u8[65536]{0}', space=vmem, size = 0x10000, scoped, tag = 'input window, operand 1, single buffered']
    #allocation7 [shape = 's32[1]{0}', space=sflag, size = 0x4, scoped, tag = 'scoped memory for tpu_custom_call.1']
    #allocation8 [shape = 'u8[65536]{0}', space=vmem, size = 0x10000, scoped, tag = 'input window, operand 3, single buffered']
    #allocation9 [shape = 'u8[8192]{0}', space=vmem, size = 0x2000, scoped, tag = 'output window, operand 0, single buffered']
    %10 = vsyncpa [#allocation4], 0
    %11 = vsyncpa [#allocation7], 0
    %12 = vsyncpa [#allocation5], 0
    // Predicated region
    $region2: #{tpu_custom_call.1} parent=1 // pred_check
      _
    $region3: #{tpu_custom_call.1} parent=1 // pred_check_branch
      %14 = sbr.rel (0) target = $region5
    $region4: #{tpu_custom_call.1} parent=1 // pred_region
      %s16 = ssub.s32 256, 256
      %17 = vsyncadd [#allocation4], %s16
      %s18 = sshll.u32 [#allocation3], 4
      %s19 = int_to_ptr.vmem [resolvable:$true] %s18
      %24 = dma.hbm_to_vmem [thread:$0]  %s0, 256, %s19, [#allocation4], 128, 128, 8
    $region5: #{tpu_custom_call.1} parent=1 // pred_fallthru
      _
    // Predicated region
    $region6: #{tpu_custom_call.1} parent=1 // pred_check
      _
    $region7: #{tpu_custom_call.1} parent=1 // pred_check_branch
      %26 = sbr.rel (0) target = $region9
    $region8: #{tpu_custom_call.1} parent=1 // pred_region
      %s28 = ssub.s32 2048, 2048
      %29 = vsyncadd [#allocation7], %s28
      %s30 = sshll.u32 [#allocation6], 4
      %s31 = int_to_ptr.vmem [resolvable:$true] %s30
      %36 = dma.hbm_to_vmem [thread:$0]  %s1, 2048, %s31, [#allocation7], 128, 128, 8
    $region9: #{tpu_custom_call.1} parent=1 // pred_fallthru
      _
    // Predicated region
    $region10: #{tpu_custom_call.1} parent=1 // pred_check
      _
    $region11: #{tpu_custom_call.1} parent=1 // pred_check_branch
      %38 = sbr.rel (0) target = $region13
    $region12: #{tpu_custom_call.1} parent=1 // pred_region
      _
    $region13: #{tpu_custom_call.1} parent=1 // pred_fallthru
      _
    // Predicated region
    $region14: #{tpu_custom_call.1} parent=1 // pred_check
      _
    $region15: #{tpu_custom_call.1} parent=1 // pred_check_branch
      %40 = sbr.rel (0) target = $region17
    $region16: #{tpu_custom_call.1} parent=1 // pred_region
      %s42 = ssub.s32 2048, 2048
      %43 = vsyncadd [#allocation7], %s42
      %s44 = sshll.u32 [#allocation8], 4
      %s45 = int_to_ptr.vmem [resolvable:$true] %s44
      %50 = dma.hbm_to_vmem [thread:$0]  %s3, 2048, %s45, [#allocation7], 128, 128, 8
    $region17: #{tpu_custom_call.1} parent=1 // pred_fallthru
      _
    // Predicated region
    $region18: #{tpu_custom_call.1} parent=1 // pred_check
      _
    $region19: #{tpu_custom_call.1} parent=1 // pred_check_branch
      %52 = sbr.rel (0) target = $region21
    $region20: #{tpu_custom_call.1} parent=1 // pred_region
      _
    $region21: #{tpu_custom_call.1} parent=1 // pred_fallthru
      _
    // Predicated region
    $region22: #{tpu_custom_call.1} parent=1 // pred_check
      _
    $region23: #{tpu_custom_call.1} parent=1 // pred_check_branch
      %54 = sbr.rel (0) target = $region25
    $region24: #{tpu_custom_call.1} parent=1 // pred_region
      %55 = dma.done [#allocation4], 256
    $region25: #{tpu_custom_call.1} parent=1 // pred_fallthru
      _
    // Predicated region
    $region26: #{tpu_custom_call.1} parent=1 // pred_check
      _
    $region27: #{tpu_custom_call.1} parent=1 // pred_check_branch
      %57 = sbr.rel (0) target = $region29
    $region28: #{tpu_custom_call.1} parent=1 // pred_region
      %58 = dma.done [#allocation7], 2048
    $region29: #{tpu_custom_call.1} parent=1 // pred_fallthru
      _
    // Predicated region
    $region30: #{tpu_custom_call.1} parent=1 // pred_check
      _
    $region31: #{tpu_custom_call.1} parent=1 // pred_check_branch
      %60 = sbr.rel (0) target = $region33
    $region32: #{tpu_custom_call.1} parent=1 // pred_region
      %61 = dma.done [#allocation7], 2048
    $region33: #{tpu_custom_call.1} parent=1 // pred_fallthru
      _
    %p62 = scmp.eq.s32.totalorder 0, 0
    // Predicated region
    $region34: #{tpu_custom_call.1} parent=1 // pred_check
      %p63 = pneg %p62
    $region35: #{tpu_custom_call.1} parent=1 // pred_check_branch
      %65 = sbr.rel (%p63) target = $region37
    $region36: #{tpu_custom_call.1} parent=1 // pred_region
      %66 = vst [vmem:[#allocation2] sm:$0xff] 0.0
      %67 = vst [vmem:[#allocation2 + $0x8] sm:$0xff] 0.0
    $region37: #{tpu_custom_call.1} parent=1 // pred_fallthru
      _
    %v68 = vld [vmem:[#allocation3] sm:$0xff]
    %v69 = vld [vmem:[#allocation3 + $0x8] sm:$0xff]
    %v70 = vld [vmem:[#allocation6] sm:$0xff]
    %v71 = vld [vmem:[#allocation6 + $0x8] sm:$0xff]
    %v72 = vld [vmem:[#allocation6 + $0x10] sm:$0xff]
    %v73 = vld [vmem:[#allocation6 + $0x18] sm:$0xff]
    %v74 = vld [vmem:[#allocation6 + $0x20] sm:$0xff]
    %v75 = vld [vmem:[#allocation6 + $0x28] sm:$0xff]
    %v76 = vld [vmem:[#allocation6 + $0x30] sm:$0xff]
    %v77 = vld [vmem:[#allocation6 + $0x38] sm:$0xff]
    %v78 = vld [vmem:[#allocation6 + $0x40] sm:$0xff]
    %v79 = vld [vmem:[#allocation6 + $0x48] sm:$0xff]
    %v80 = vld [vmem:[#allocation6 + $0x50] sm:$0xff]
    %v81 = vld [vmem:[#allocation6 + $0x58] sm:$0xff]
    %v82 = vld [vmem:[#allocation6 + $0x60] sm:$0xff]
    %v83 = vld [vmem:[#allocation6 + $0x68] sm:$0xff]
    %v84 = vld [vmem:[#allocation6 + $0x70] sm:$0xff]
    %v85 = vld [vmem:[#allocation6 + $0x78] sm:$0xff]
    %v86 = vld [vmem:[%s2] sm:$0x1]
    %v88 = vlaneseq
    %v89 = vshrl.u32 %v88, 7
    %v90 = vsub.s32 0, %v89
    %v91 = vrot.slane %v86, %v90
    %93 = vmatprep.subr.mxu0 0.0
    %94 = vmatpush1.msra.mxu0 %v70
    %95 = vmatprep.subr.mxu0 0.0
    %96 = vmatpush1.msra.mxu0 %v71
    %97 = vmatprep.subr.mxu0 0.0
    %98 = vmatpush1.msra.mxu0 %v72
    %99 = vmatprep.subr.mxu0 0.0
    %100 = vmatpush1.msra.mxu0 %v73
    %101 = vmatprep.subr.mxu0 0.0
    %102 = vmatpush1.msra.mxu0 %v74
    %103 = vmatprep.subr.mxu0 0.0
    %104 = vmatpush1.msra.mxu0 %v75
    %105 = vmatprep.subr.mxu0 0.0
    %106 = vmatpush1.msra.mxu0 %v76
    %107 = vmatprep.subr.mxu0 0.0
    %108 = vmatpush1.msra.mxu0 %v77
    %109 = vmatprep.subr.mxu0 0.0
    %110 = vmatpush1.msra.mxu0 %v78
    %111 = vmatprep.subr.mxu0 0.0
    %112 = vmatpush1.msra.mxu0 %v79
    %113 = vmatprep.subr.mxu0 0.0
    %114 = vmatpush1.msra.mxu0 %v80
    %115 = vmatprep.subr.mxu0 0.0
    %116 = vmatpush1.msra.mxu0 %v81
    %117 = vmatprep.subr.mxu0 0.0
    %118 = vmatpush1.msra.mxu0 %v82
    %119 = vmatprep.subr.mxu0 0.0
    %120 = vmatpush1.msra.mxu0 %v83
    %121 = vmatprep.subr.mxu0 0.0
    %122 = vmatpush1.msra.mxu0 %v84
    %123 = vmatprep.subr.mxu0 0.0
    %124 = vmatpush1.msra.mxu0 %v85
    %125 = vmatprep.subr.mxu0 0.0
    %126 = vmatpush1.msra.mxu0 0.0
    %127 = vmatprep.subr.mxu0 0.0
    %128 = vmatpush1.msra.mxu0 0.0
    %129 = vmatprep.subr.mxu0 0.0
    %130 = vmatpush1.msra.mxu0 0.0
    %131 = vmatprep.subr.mxu0 0.0
    %132 = vmatpush1.msra.mxu0 0.0
    %133 = vmatprep.subr.mxu0 0.0
    %134 = vmatpush1.msra.mxu0 0.0
    %135 = vmatprep.subr.mxu0 0.0
    %136 = vmatpush1.msra.mxu0 0.0
    %137 = vmatprep.subr.mxu0 0.0
    %138 = vmatpush1.msra.mxu0 0.0
    %139 = vmatprep.subr.mxu0 0.0
    %140 = vmatpush1.msra.mxu0 0.0
    %141 = vmatprep.subr.mxu0 0.0
    %142 = vmatpush1.msra.mxu0 0.0
    %143 = vmatprep.subr.mxu0 0.0
    %144 = vmatpush1.msra.mxu0 0.0
    %145 = vmatprep.subr.mxu0 0.0
    %146 = vmatpush1.msra.mxu0 0.0
    %147 = vmatprep.subr.mxu0 0.0
    %148 = vmatpush1.msra.mxu0 0.0
    %149 = vmatprep.subr.mxu0 0.0
    %150 = vmatpush1.msra.mxu0 0.0
    %151 = vmatprep.subr.mxu0 0.0
    %152 = vmatpush1.msra.mxu0 0.0
    %153 = vmatprep.subr.mxu0 0.0
    %154 = vmatpush1.msra.mxu0 0.0
    %155 = vmatprep.subr.mxu0 0.0
    %156 = vmatpush1.msra.mxu0 0.0
    %157 = vmatprep.mubr.f32.mxu0 0.0
    %158 = vmatmul.mubr.f32.gmra.mrb[0].mxu0 %v68
    %v159 = vpop.f32.mrb[0].mxu0
    %v160 = vadd.f32 %v91, %v159
    %v161 = vpop.f32.mrb[0].mxu0
    %162 = vmatprep.mubr.f32.mxu0 0.0
    %163 = vmatmul.mubr.f32.gmra.mrb[0].mxu0 %v69
    %v164 = vpop.f32.mrb[0].mxu0
    %v165 = vadd.f32 %v91, %v164
    %v166 = vpop.f32.mrb[0].mxu0
    %167 = vdwg.mxu0
    %v168 = vmax.f32 %v160, 0.0
    %v169 = vmax.f32 %v165, 0.0
    %v170 = vld [vmem:[#allocation8] sm:$0xff]
    %v171 = vld [vmem:[#allocation8 + $0x8] sm:$0xff]
    %v172 = vld [vmem:[#allocation8 + $0x10] sm:$0xff]
    %v173 = vld [vmem:[#allocation8 + $0x18] sm:$0xff]
    %v174 = vld [vmem:[#allocation8 + $0x20] sm:$0xff]
    %v175 = vld [vmem:[#allocation8 + $0x28] sm:$0xff]
    %v176 = vld [vmem:[#allocation8 + $0x30] sm:$0xff]
    %v177 = vld [vmem:[#allocation8 + $0x38] sm:$0xff]
    %v178 = vld [vmem:[#allocation8 + $0x40] sm:$0xff]
    %v179 = vld [vmem:[#allocation8 + $0x48] sm:$0xff]
    %v180 = vld [vmem:[#allocation8 + $0x50] sm:$0xff]
    %v181 = vld [vmem:[#allocation8 + $0x58] sm:$0xff]
    %v182 = vld [vmem:[#allocation8 + $0x60] sm:$0xff]
    %v183 = vld [vmem:[#allocation8 + $0x68] sm:$0xff]
    %v184 = vld [vmem:[#allocation8 + $0x70] sm:$0xff]
    %v185 = vld [vmem:[#allocation8 + $0x78] sm:$0xff]
    %186 = vmatprep.subr.mxu0 0.0
    %187 = vmatpush1.msra.mxu0 %v170
    %188 = vmatprep.subr.mxu0 0.0
    %189 = vmatpush1.msra.mxu0 %v171
    %190 = vmatprep.subr.mxu0 0.0
    %191 = vmatpush1.msra.mxu0 %v172
    %192 = vmatprep.subr.mxu0 0.0
    %193 = vmatpush1.msra.mxu0 %v173
    %194 = vmatprep.subr.mxu0 0.0
    %195 = vmatpush1.msra.mxu0 %v174
    %196 = vmatprep.subr.mxu0 0.0
    %197 = vmatpush1.msra.mxu0 %v175
    %198 = vmatprep.subr.mxu0 0.0
    %199 = vmatpush1.msra.mxu0 %v176
    %200 = vmatprep.subr.mxu0 0.0
    %201 = vmatpush1.msra.mxu0 %v177
    %202 = vmatprep.subr.mxu0 0.0
    %203 = vmatpush1.msra.mxu0 %v178
    %204 = vmatprep.subr.mxu0 0.0
    %205 = vmatpush1.msra.mxu0 %v179
    %206 = vmatprep.subr.mxu0 0.0
    %207 = vmatpush1.msra.mxu0 %v180
    %208 = vmatprep.subr.mxu0 0.0
    %209 = vmatpush1.msra.mxu0 %v181
    %210 = vmatprep.subr.mxu0 0.0
    %211 = vmatpush1.msra.mxu0 %v182
    %212 = vmatprep.subr.mxu0 0.0
    %213 = vmatpush1.msra.mxu0 %v183
    %214 = vmatprep.subr.mxu0 0.0
    %215 = vmatpush1.msra.mxu0 %v184
    %216 = vmatprep.subr.mxu0 0.0
    %217 = vmatpush1.msra.mxu0 %v185
    %218 = vmatprep.subr.mxu0 0.0
    %219 = vmatpush1.msra.mxu0 0.0
    %220 = vmatprep.subr.mxu0 0.0
    %221 = vmatpush1.msra.mxu0 0.0
    %222 = vmatprep.subr.mxu0 0.0
    %223 = vmatpush1.msra.mxu0 0.0
    %224 = vmatprep.subr.mxu0 0.0
    %225 = vmatpush1.msra.mxu0 0.0
    %226 = vmatprep.subr.mxu0 0.0
    %227 = vmatpush1.msra.mxu0 0.0
    %228 = vmatprep.subr.mxu0 0.0
    %229 = vmatpush1.msra.mxu0 0.0
    %230 = vmatprep.subr.mxu0 0.0
    %231 = vmatpush1.msra.mxu0 0.0
    %232 = vmatprep.subr.mxu0 0.0
    %233 = vmatpush1.msra.mxu0 0.0
    %234 = vmatprep.subr.mxu0 0.0
    %235 = vmatpush1.msra.mxu0 0.0
    %236 = vmatprep.subr.mxu0 0.0
    %237 = vmatpush1.msra.mxu0 0.0
    %238 = vmatprep.subr.mxu0 0.0
    %239 = vmatpush1.msra.mxu0 0.0
    %240 = vmatprep.subr.mxu0 0.0
    %241 = vmatpush1.msra.mxu0 0.0
    %242 = vmatprep.subr.mxu0 0.0
    %243 = vmatpush1.msra.mxu0 0.0
    %244 = vmatprep.subr.mxu0 0.0
    %245 = vmatpush1.msra.mxu0 0.0
    %246 = vmatprep.subr.mxu0 0.0
    %247 = vmatpush1.msra.mxu0 0.0
    %248 = vmatprep.subr.mxu0 0.0
    %249 = vmatpush1.msra.mxu0 0.0
    %250 = vmatprep.mubr.f32.mxu0 0.0
    %251 = vmatmul.mubr.f32.gmra.mrb[0].mxu0 %v168
    %v252 = vpop.f32.mrb[0].mxu0
    %v253 = vadd.f32 0.0, %v252
    %v254 = vpop.f32.mrb[0].mxu0
    %255 = vmatprep.mubr.f32.mxu0 0.0
    %256 = vmatmul.mubr.f32.gmra.mrb[0].mxu0 %v169
    %v257 = vpop.f32.mrb[0].mxu0
    %v258 = vadd.f32 0.0, %v257
    %v259 = vpop.f32.mrb[0].mxu0
    %260 = vdwg.mxu0
    %p261 = scmp.lt.s32.totalorder 0, 0
    // Predicated region
    $region38: #{tpu_custom_call.1} parent=1 // pred_check
      %p262 = pneg %p261
    $region39: #{tpu_custom_call.1} parent=1 // pred_check_branch
      %264 = sbr.rel (%p262) target = $region41
    $region40: #{tpu_custom_call.1} parent=1 // pred_region
      %v265 = vld [vmem:[#allocation2] sm:$0xff]
      %v266 = vld [vmem:[#allocation2 + $0x8] sm:$0xff]
      %v267 = vadd.f32 %v265, %v253
      %v268 = vadd.f32 %v266, %v258
      %269 = vst [vmem:[#allocation2] sm:$0xff] %v267
      %270 = vst [vmem:[#allocation2 + $0x8] sm:$0xff] %v268
    $region41: #{tpu_custom_call.1} parent=1 // pred_fallthru
      _
    // Predicated region
    $region42: #{tpu_custom_call.1} parent=1 // pred_check
      %p271 = pneg %p62
    $region43: #{tpu_custom_call.1} parent=1 // pred_check_branch
      %273 = sbr.rel (%p271) target = $region45
    $region44: #{tpu_custom_call.1} parent=1 // pred_region
      %v274 = vld [vmem:[#allocation2] sm:$0xff]
      %v275 = vld [vmem:[#allocation2 + $0x8] sm:$0xff]
      %v276 = vadd.f32 %v274, %v253
      %v277 = vadd.f32 %v275, %v258
      %v278 = vld [vmem:[%s4] sm:$0x1]
      %v280 = vlaneseq
      %v281 = vshrl.u32 %v280, 7
      %v282 = vsub.s32 0, %v281
      %v283 = vrot.slane %v278, %v282
      %v285 = vadd.f32 %v276, %v283
      %v286 = vadd.f32 %v277, %v283
      %287 = vst [vmem:[#allocation9] sm:$0xff] %v285
      %288 = vst [vmem:[#allocation9 + $0x8] sm:$0xff] %v286
    $region45: #{tpu_custom_call.1} parent=1 // pred_fallthru
      _
    // Predicated region
    $region46: #{tpu_custom_call.1} parent=1 // pred_check
      _
    $region47: #{tpu_custom_call.1} parent=1 // pred_check_branch
      %290 = sbr.rel (0) target = $region49
    $region48: #{tpu_custom_call.1} parent=1 // pred_region
      %s292 = ssub.s32 256, 256
      %293 = vsyncadd [#allocation5], %s292
      %s294 = sshll.u32 [#allocation9], 4
      %s295 = int_to_ptr.vmem [resolvable:$true] %s294
      %300 = dma.vmem_to_hbm [thread:$0]  %s295, 256, %s5, [#allocation5], 128, 128, 8
    $region49: #{tpu_custom_call.1} parent=1 // pred_fallthru
      _
    // Predicated region
    $region50: #{tpu_custom_call.1} parent=1 // pred_check
      _
    $region51: #{tpu_custom_call.1} parent=1 // pred_check_branch
      %302 = sbr.rel (0) target = $region53
    $region52: #{tpu_custom_call.1} parent=1 // pred_region
      %303 = dma.done [#allocation5], 256
    $region53: #{tpu_custom_call.1} parent=1 // pred_fallthru
      _
    %304 = vsyncpa [#allocation4], 1
    %305 = vsyncpa [#allocation7], 1
    %306 = vsyncpa [#allocation5], 1

</llo_original>
